<compile_context>
chip_gen: v5e
topology: v5e:2x2
jax: 0.10.0
libtpu: 0.0.40
codegen_flags: <defaults>
</compile_context>

<pallas_src>
import jax
import jax.numpy as jnp
from jax.experimental import pallas as pl
from jax.experimental.pallas import tpu as pltpu

LANE = 128
SUBLANE = 8
DEFAULT_BLOCK_ROWS = 2048   # 128-lane rows per grid step (f32: 1 MiB/input/step)
NUM_CHUNKS = 2              # leading "parallel" axis (engages both TCs on v7x)


def _iou_kernel(x_ref, t_ref, acc_ref):
    """Accumulate (8,128)-shaped partial sums of sigmoid(x)*t and sigmoid(x)+t.

    x_ref/t_ref: (sub, 8, 128) block of the inputs (native dtype).
    acc_ref:     (1, 2, 8, 128) f32 output block, resident across the inner
                 reduction grid axis; [0,0]=intersection partials, [0,1]=total.
    """
    j = pl.program_id(1)

    @pl.when(j == 0)
    def _():
        acc_ref[...] = jnp.zeros_like(acc_ref)

    x = x_ref[...].astype(jnp.float32)
    t = t_ref[...].astype(jnp.float32)
    # sigmoid via a single EUP op; saturates cleanly for large |x|.
    s = 0.5 * (jnp.tanh(0.5 * x) + 1.0)

    acc_ref[0, 0, :, :] = acc_ref[0, 0, :, :] + jnp.sum(s * t, axis=0)
    acc_ref[0, 1, :, :] = acc_ref[0, 1, :, :] + jnp.sum(s + t, axis=0)


def _partial_sums_pallas(x_main, t_main, num_blocks, block_rows, num_chunks):
    """Pallas reduction over the (num_blocks * block_rows * LANE)-element prefix."""
    sub = block_rows // SUBLANE
    x3 = x_main.reshape(num_blocks * sub, SUBLANE, LANE)
    t3 = t_main.reshape(num_blocks * sub, SUBLANE, LANE)

    # Split blocks across a leading "parallel" chunk axis when it divides evenly.
    p = num_chunks if (num_blocks >= num_chunks and num_blocks % num_chunks == 0) else 1
    blocks_per_chunk = num_blocks // p

    def in_map(pi, j):
        return (pi * blocks_per_chunk + j, 0, 0)

    parts = pl.pallas_call(
        _iou_kernel,
        out_shape=jax.ShapeDtypeStruct((p, 2, SUBLANE, LANE), jnp.float32),
        grid_spec=pltpu.PrefetchScalarGridSpec(
            num_scalar_prefetch=0,
            grid=(p, blocks_per_chunk),
            in_specs=[
                pl.BlockSpec((sub, SUBLANE, LANE), in_map),
                pl.BlockSpec((sub, SUBLANE, LANE), in_map),
            ],
            out_specs=pl.BlockSpec((1, 2, SUBLANE, LANE),
                                   lambda pi, j: (pi, 0, 0, 0)),
        ),
        compiler_params=pltpu.CompilerParams(
            dimension_semantics=("parallel", "arbitrary")),
    )(x3, t3)

    intersection = jnp.sum(parts[:, 0])
    total = jnp.sum(parts[:, 1])
    return intersection, total


def iou_loss(inputs, targets, smooth=1.0,
             block_rows=DEFAULT_BLOCK_ROWS, num_chunks=NUM_CHUNKS):
    # Flatten in native dtype: no host-side astype/pad -> no extra HBM pass.
    x = inputs.reshape(-1)
    t = targets.reshape(-1)
    n = x.shape[0]

    lane_rows = n // LANE                            # complete 128-lane rows
    if lane_rows >= SUBLANE:
        br = min(block_rows, (lane_rows // SUBLANE) * SUBLANE)
        num_blocks = lane_rows // br
        main_elems = num_blocks * br * LANE
    else:
        num_blocks = 0
        main_elems = 0

    inter = jnp.float32(0.0)
    total = jnp.float32(0.0)

    if num_blocks > 0:
        pi_, pt_ = _partial_sums_pallas(x[:main_elems], t[:main_elems],
                                        num_blocks, br, num_chunks)
        inter = inter + pi_
        total = total + pt_

    if main_elems < n:
        # Ragged tail (< one block): plain JAX, avoids padding the full tensors.
        xt = x[main_elems:].astype(jnp.float32)
        tt = t[main_elems:].astype(jnp.float32)
        st = jax.nn.sigmoid(xt)
        inter = inter + jnp.sum(st * tt)
        total = total + jnp.sum(st + tt)

    union = total - inter
    iou = (inter + float(smooth)) / (union + float(smooth))
    return 1.0 - iou


def _iou_loss_ref(inputs, targets, smooth=1.0):
    s = jax.nn.sigmoid(inputs.reshape(-1).astype(jnp.float32))
    t = targets.reshape(-1).astype(jnp.float32)
    intersection = jnp.sum(s * t)
    total = jnp.sum(s + t)
    union = total - intersection
    return 1.0 - (intersection + smooth) / (union + smooth)


if __name__ == "__main__":
    key = jax.random.PRNGKey(0)
    k1, k2 = jax.random.split(key)
    # NCHW logits and binary targets, small shapes
    x = jax.random.normal(k1, (2, 4, 16, 16), dtype=jnp.float32)
    y = (jax.random.uniform(k2, (2, 4, 16, 16)) > 0.5).astype(jnp.float32)

    loss = jax.block_until_ready(iou_loss(x, y, smooth=1.0))
    ref = jax.block_until_ready(_iou_loss_ref(x, y, smooth=1.0))

    assert jnp.allclose(loss, ref, rtol=1e-5, atol=1e-5), (loss, ref)
    print("KERNEL_OK")
</pallas_src>

<mosaic_0001>
module attributes {stable_mosaic.version = 11 : i64} {
  func.func @_iou_kernel(%arg0: i32, %arg1: i32, %arg2: memref<2x8x128xf32, #tpu.memory_space<vmem>>, %arg3: memref<2x8x128xf32, #tpu.memory_space<vmem>>, %arg4: memref<1x2x8x128xf32, #tpu.memory_space<vmem>>) attributes {dimension_semantics = [#tpu.dimension_semantics<parallel>, #tpu.dimension_semantics<arbitrary>], iteration_bounds = array<i64: 1, 1>, scalar_prefetch = 0 : i64, scratch_operands = 0 : i64, tpu.core_type = #tpu.core_type<tc>, window_params = [{transform_indices = @transform_0, window_bounds = array<i64: 2, 8, 128>}, {transform_indices = @transform_1, window_bounds = array<i64: 2, 8, 128>}, {transform_indices = @transform_2, window_bounds = array<i64: 1, 2, 8, 128>}]} {
    %c0_i32 = arith.constant 0 : i32
    %0 = arith.cmpi eq, %arg1, %c0_i32 : i32
    %1 = arith.extui %0 : i1 to i32
    %c0_i32_0 = arith.constant 0 : i32
    %2 = arith.cmpi ne, %1, %c0_i32_0 : i32
    scf.if %2 {
      %cst_25 = arith.constant 0.000000e+00 : f32
      %28 = vector.broadcast %cst_25 : f32 to vector<1x2x8x128xf32>
      %c0_26 = arith.constant 0 : index
      %c0_27 = arith.constant 0 : index
      %c0_28 = arith.constant 0 : index
      %c0_29 = arith.constant 0 : index
      %29 = vector.load %arg4[%c0_26, %c0_27, %c0_28, %c0_29] : memref<1x2x8x128xf32, #tpu.memory_space<vmem>>, vector<1x2x8x128xf32>
      tpu.vector_store %arg4[%c0_26, %c0_27, %c0_28, %c0_29], %28 {strides = array<i32>} : memref<1x2x8x128xf32, #tpu.memory_space<vmem>>, vector<1x2x8x128xf32>,
    } else {
    }
    %c0 = arith.constant 0 : index
    %c0_1 = arith.constant 0 : index
    %c0_2 = arith.constant 0 : index
    %3 = vector.load %arg2[%c0, %c0_1, %c0_2] : memref<2x8x128xf32, #tpu.memory_space<vmem>>, vector<2x8x128xf32>
    %c0_3 = arith.constant 0 : index
    %c0_4 = arith.constant 0 : index
    %c0_5 = arith.constant 0 : index
    %4 = vector.load %arg3[%c0_3, %c0_4, %c0_5] : memref<2x8x128xf32, #tpu.memory_space<vmem>>, vector<2x8x128xf32>
    %cst = arith.constant 5.000000e-01 : f32
    %5 = vector.broadcast %cst : f32 to vector<2x8x128xf32>
    %6 = arith.mulf %5, %3 : vector<2x8x128xf32>
    %7 = math.tanh %6 : vector<2x8x128xf32>
    %cst_6 = arith.constant 1.000000e+00 : f32
    %8 = vector.broadcast %cst_6 : f32 to vector<2x8x128xf32>
    %9 = arith.addf %7, %8 : vector<2x8x128xf32>
    %cst_7 = arith.constant 5.000000e-01 : f32
    %10 = vector.broadcast %cst_7 : f32 to vector<2x8x128xf32>
    %11 = arith.mulf %10, %9 : vector<2x8x128xf32>
    %c0_8 = arith.constant 0 : index
    %c0_9 = arith.constant 0 : index
    %c0_10 = arith.constant 0 : index
    %c0_11 = arith.constant 0 : index
    %12 = vector.load %arg4[%c0_8, %c0_9, %c0_10, %c0_11] : memref<1x2x8x128xf32, #tpu.memory_space<vmem>>, vector<1x1x8x128xf32>
    %13 = vector.shape_cast %12 : vector<1x1x8x128xf32> to vector<8x128xf32>
    %14 = arith.mulf %11, %4 : vector<2x8x128xf32>
    %cst_12 = arith.constant dense<0.000000e+00> : vector<8x128xf32>
    %15 = vector.multi_reduction <add>, %14, %cst_12 [0] : vector<2x8x128xf32> to vector<8x128xf32>
    %16 = arith.addf %13, %15 : vector<8x128xf32>
    %c0_13 = arith.constant 0 : index
    %c0_14 = arith.constant 0 : index
    %c0_15 = arith.constant 0 : index
    %c0_16 = arith.constant 0 : index
    %17 = vector.load %arg4[%c0_13, %c0_14, %c0_15, %c0_16] : memref<1x2x8x128xf32, #tpu.memory_space<vmem>>, vector<1x1x8x128xf32>
    %18 = vector.shape_cast %17 : vector<1x1x8x128xf32> to vector<8x128xf32>
    %19 = vector.shape_cast %16 : vector<8x128xf32> to vector<1x1x8x128xf32>
    tpu.vector_store %arg4[%c0_13, %c0_14, %c0_15, %c0_16], %19 {strides = array<i32>} : memref<1x2x8x128xf32, #tpu.memory_space<vmem>>, vector<1x1x8x128xf32>,
    %c0_17 = arith.constant 0 : index
    %c1 = arith.constant 1 : index
    %c0_18 = arith.constant 0 : index
    %c0_19 = arith.constant 0 : index
    %20 = vector.load %arg4[%c0_17, %c1, %c0_18, %c0_19] : memref<1x2x8x128xf32, #tpu.memory_space<vmem>>, vector<1x1x8x128xf32>
    %21 = vector.shape_cast %20 : vector<1x1x8x128xf32> to vector<8x128xf32>
    %22 = arith.addf %11, %4 : vector<2x8x128xf32>
    %cst_20 = arith.constant dense<0.000000e+00> : vector<8x128xf32>
    %23 = vector.multi_reduction <add>, %22, %cst_20 [0] : vector<2x8x128xf32> to vector<8x128xf32>
    %24 = arith.addf %21, %23 : vector<8x128xf32>
    %c0_21 = arith.constant 0 : index
    %c1_22 = arith.constant 1 : index
    %c0_23 = arith.constant 0 : index
    %c0_24 = arith.constant 0 : index
    %25 = vector.load %arg4[%c0_21, %c1_22, %c0_23, %c0_24] : memref<1x2x8x128xf32, #tpu.memory_space<vmem>>, vector<1x1x8x128xf32>
    %26 = vector.shape_cast %25 : vector<1x1x8x128xf32> to vector<8x128xf32>
    %27 = vector.shape_cast %24 : vector<8x128xf32> to vector<1x1x8x128xf32>
    tpu.vector_store %arg4[%c0_21, %c1_22, %c0_23, %c0_24], %27 {strides = array<i32>} : memref<1x2x8x128xf32, #tpu.memory_space<vmem>>, vector<1x1x8x128xf32>,
    return
  }
  func.func @transform_0(%arg0: i32, %arg1: i32) -> (i32, i32, i32) {
    %c1_i32 = arith.constant 1 : i32
    %0 = arith.muli %arg0, %c1_i32 : i32
    %1 = arith.addi %0, %arg1 : i32
    %c0_i32 = arith.constant 0 : i32
    %c0_i32_0 = arith.constant 0 : i32
    %c0_i32_1 = arith.constant 0 : i32
    return %1, %c0_i32, %c0_i32_0 : i32, i32, i32
  }
  func.func @transform_1(%arg0: i32, %arg1: i32) -> (i32, i32, i32) {
    %c1_i32 = arith.constant 1 : i32
    %0 = arith.muli %arg0, %c1_i32 : i32
    %1 = arith.addi %0, %arg1 : i32
    %c0_i32 = arith.constant 0 : i32
    %c0_i32_0 = arith.constant 0 : i32
    %c0_i32_1 = arith.constant 0 : i32
    return %1, %c0_i32, %c0_i32_0 : i32, i32, i32
  }
  func.func @transform_2(%arg0: i32, %arg1: i32) -> (i32, i32, i32, i32) {
    %c0_i32 = arith.constant 0 : i32
    %c0_i32_0 = arith.constant 0 : i32
    %c0_i32_1 = arith.constant 0 : i32
    %c0_i32_2 = arith.constant 0 : i32
    return %arg0, %c0_i32, %c0_i32_0, %c0_i32_1 : i32, i32, i32, i32
  }
}

</mosaic_0001>

<llo_original>
// kernel: tpu_custom_call.1
$region0: #{tpu_custom_call.1}
  #allocation0 [shape = 'u32[]', space=smem, size = 0x4, offset = 0x4, fixed_abs, tag = 'smem constant byte address 0x4 - core index']
  #allocation1 [shape = 'u32[72,128]{1,0:T(1,128)}', space=vmem, size = 0x9000, scoped, tag = 'internal scratch']
  %s0 = inlined_call_operand.hbm [shape: f32[2,8,128], index: 0, kind: input, shape index: {}]
  %s1 = inlined_call_operand.hbm [shape: f32[2,8,128], index: 1, kind: input, shape index: {}]
  %s2 = inlined_call_operand.hbm [shape: f32[1,2,8,128], index: 2, kind: output, shape index: {}]
  %s3 = sld [smem:[#allocation0]]
  $region30: #{tpu_custom_call.1} parent=0
    _
  %s5 = ssub.s32 1, %s3
  %s6 = scalar_select 0, %s5, %s3
  $region1: #{tpu_custom_call.1} parent=0
    #allocation2 [shape = 'u8[8192]{0}', space=vmem, size = 0x2000, scoped, tag = 'input window, operand 0, single buffered']
    #allocation3 [shape = 's32[1]{0}', space=sflag, size = 0x4, scoped, tag = 'scoped memory for tpu_custom_call.1']
    #allocation4 [shape = 's32[1]{0}', space=sflag, size = 0x4, scoped, tag = 'scoped memory for tpu_custom_call.1']
    #allocation5 [shape = 'u8[8192]{0}', space=vmem, size = 0x2000, scoped, tag = 'input window, operand 1, single buffered']
    #allocation6 [shape = 's32[1]{0}', space=sflag, size = 0x4, scoped, tag = 'scoped memory for tpu_custom_call.1']
    #allocation7 [shape = 'u8[8192]{0}', space=vmem, size = 0x2000, scoped, tag = 'output window, operand 0, single buffered']
    %7 = vsyncpa [#allocation3], 0
    %8 = vsyncpa [#allocation6], 0
    %9 = vsyncpa [#allocation4], 0
    // Predicated region
    $region2: #{tpu_custom_call.1} parent=1 // pred_check
      _
    $region3: #{tpu_custom_call.1} parent=1 // pred_check_branch
      %11 = sbr.rel (0) target = $region5
    $region4: #{tpu_custom_call.1} parent=1 // pred_region
      %s12 = sadd.s32 0, 0
      %s13 = smul.u32 2, %s12
      %15 = vsyncadd [#allocation3], 0
      %s16 = smul.addr %s13, 8
      %s17 = scalar_lea.hbm %s0, %s16
      %s18 = sshll.u32 %s17, 4
      %s19 = int_to_ptr.hbm [resolvable:$true] %s18
      %s20 = sshll.u32 [#allocation2], 4
      %s21 = int_to_ptr.vmem [resolvable:$true] %s20
      %26 = dma.hbm_to_vmem [thread:$0]  %s19, 256, %s21, [#allocation3], 128, 128, 8
    $region5: #{tpu_custom_call.1} parent=1 // pred_fallthru
      _
    // Predicated region
    $region6: #{tpu_custom_call.1} parent=1 // pred_check
      _
    $region7: #{tpu_custom_call.1} parent=1 // pred_check_branch
      %28 = sbr.rel (0) target = $region9
    $region8: #{tpu_custom_call.1} parent=1 // pred_region
      %s29 = sadd.s32 0, 0
      %s30 = smul.u32 2, %s29
      %32 = vsyncadd [#allocation6], 0
      %s33 = smul.addr %s30, 8
      %s34 = scalar_lea.hbm %s1, %s33
      %s35 = sshll.u32 %s34, 4
      %s36 = int_to_ptr.hbm [resolvable:$true] %s35
      %s37 = sshll.u32 [#allocation5], 4
      %s38 = int_to_ptr.vmem [resolvable:$true] %s37
      %43 = dma.hbm_to_vmem [thread:$0]  %s36, 256, %s38, [#allocation6], 128, 128, 8
    $region9: #{tpu_custom_call.1} parent=1 // pred_fallthru
      _
    // Predicated region
    $region10: #{tpu_custom_call.1} parent=1 // pred_check
      _
    $region11: #{tpu_custom_call.1} parent=1 // pred_check_branch
      %45 = sbr.rel (0) target = $region13
    $region12: #{tpu_custom_call.1} parent=1 // pred_region
      %47 = dma.done [#allocation3], 256
    $region13: #{tpu_custom_call.1} parent=1 // pred_fallthru
      _
    // Predicated region
    $region14: #{tpu_custom_call.1} parent=1 // pred_check
      _
    $region15: #{tpu_custom_call.1} parent=1 // pred_check_branch
      %49 = sbr.rel (0) target = $region17
    $region16: #{tpu_custom_call.1} parent=1 // pred_region
      %51 = dma.done [#allocation6], 256
    $region17: #{tpu_custom_call.1} parent=1 // pred_fallthru
      _
    %s52 = sadd.s32 0, 0
    %s53 = smul.u32 2, %s52
    %s54 = sadd.s32 0, 0
    %s55 = smul.u32 2, %s54
    %p56 = scmp.eq.s32.totalorder 0, 0
    // Predicated region
    $region18: #{tpu_custom_call.1} parent=1 // pred_check
      %p57 = pneg %p56
    $region19: #{tpu_custom_call.1} parent=1 // pred_check_branch
      %59 = sbr.rel (%p57) target = $region21
    $region20: #{tpu_custom_call.1} parent=1 // pred_region
      %60 = vst [vmem:[#allocation7] sm:$0xff] 0.0
      %61 = vst [vmem:[#allocation7 + $0x8] sm:$0xff] 0.0
    $region21: #{tpu_custom_call.1} parent=1 // pred_fallthru
      _
    %v62 = vld [vmem:[#allocation2] sm:$0xff]
    %v63 = vld [vmem:[#allocation2 + $0x8] sm:$0xff]
    %v64 = vld [vmem:[#allocation5] sm:$0xff]
    %v65 = vld [vmem:[#allocation5 + $0x8] sm:$0xff]
    %v66 = vmul.f32 %v62, 0.5
    %v67 = vmul.f32 %v63, 0.5
    %v68 = vtanh.pop %v66
    %v69 = vtanh.pop %v67
    %v70 = vadd.f32 %v68, 1.0
    %v71 = vadd.f32 %v69, 1.0
    %v72 = vmul.f32 %v70, 0.5
    %v73 = vmul.f32 %v71, 0.5
    %v74 = vld [vmem:[#allocation7] sm:$0xff]
    %v75 = vmul.f32 %v72, %v64
    %v76 = vmul.f32 %v73, %v65
    %v77 = vadd.f32 %v75, %v76
    %v78 = vadd.f32 %v74, %v77
    %79 = vst [vmem:[#allocation7] sm:$0xff] %v78
    %s80 = scalar_lea.vmem [#allocation7], 8
    %v81 = vld [vmem:[%s80] sm:$0xff]
    %v82 = vadd.f32 %v72, %v64
    %v83 = vadd.f32 %v73, %v65
    %v84 = vadd.f32 %v82, %v83
    %v85 = vadd.f32 %v81, %v84
    %86 = vst [vmem:[%s80] sm:$0xff] %v85
    // Predicated region
    $region22: #{tpu_custom_call.1} parent=1 // pred_check
      _
    $region23: #{tpu_custom_call.1} parent=1 // pred_check_branch
      %88 = sbr.rel (0) target = $region25
    $region24: #{tpu_custom_call.1} parent=1 // pred_region
      %90 = vsyncadd [#allocation4], 0
      %s91 = sshll.u32 [#allocation7], 4
      %s92 = int_to_ptr.vmem [resolvable:$true] %s91
      %s93 = sshll.u32 %s2, 4
      %s94 = int_to_ptr.hbm [resolvable:$true] %s93
      %99 = dma.vmem_to_hbm [thread:$0]  %s92, 256, %s94, [#allocation4], 128, 128, 8
    $region25: #{tpu_custom_call.1} parent=1 // pred_fallthru
      _
    // Predicated region
    $region26: #{tpu_custom_call.1} parent=1 // pred_check
      _
    $region27: #{tpu_custom_call.1} parent=1 // pred_check_branch
      %101 = sbr.rel (0) target = $region29
    $region28: #{tpu_custom_call.1} parent=1 // pred_region
      %103 = dma.done [#allocation4], 256
    $region29: #{tpu_custom_call.1} parent=1 // pred_fallthru
      _
    %104 = vsyncpa [#allocation3], 1
    %105 = vsyncpa [#allocation6], 1
    %106 = vsyncpa [#allocation4], 1

</llo_original>
